<compile_context>
chip_gen: v7x
topology: tpu7x:2x2x1
jax: 0.10.0
libtpu: 0.0.40
codegen_flags: <defaults>
</compile_context>

<pallas_src>
import jax
import jax.numpy as jnp
from jax.experimental import pallas as pl
from jax.experimental.pallas import tpu as pltpu

LANE = 128
SUBLANE = 8
MXU_DTYPE = jnp.bfloat16            # MXU operand dtype (f32 accumulation everywhere)
VMEM_LIMIT = 48 * 1024 * 1024       # explicit scoped-VMEM budget (fits v5e/v6e/v7x)


def _round_up(x, m):
    return (x + m - 1) // m * m


def _pad2d(a, rows, cols):
    r, c = a.shape
    if r == rows and c == cols:
        return a
    return jnp.pad(a, ((0, rows - r), (0, cols - c)))


# ---------------------------------------------------------------------------
# Inference path: y_pred = sigmoid(x @ W_t + b), tiled M/N/K matmul.
# ---------------------------------------------------------------------------
def linear_sigmoid(x, w_t, b, *, tm_cap=128, tn_cap=256, tk_cap=512):
    B, K = x.shape
    Kw, N = w_t.shape
    assert K == Kw, "weight/input dim mismatch"

    tm = min(tm_cap, _round_up(B, SUBLANE))
    M_pad = _round_up(B, tm)
    K_pad = _round_up(K, LANE)
    N_pad = _round_up(N, LANE)
    tk = min(tk_cap, K_pad)
    tn = min(tn_cap, N_pad)

    x_p = _pad2d(x, M_pad, K_pad).astype(MXU_DTYPE)
    w_p = _pad2d(w_t, K_pad, N_pad).astype(MXU_DTYPE)
    b_p = jnp.broadcast_to(
        jnp.pad(b.astype(jnp.float32), (0, N_pad - N))[None, :], (tm, N_pad))

    grid = (M_pad // tm, N_pad // tn, K_pad // tk)

    def kernel(x_ref, w_ref, b_ref, o_ref, acc_ref):
        k = pl.program_id(2)

        @pl.when(k == 0)
        def _():
            acc_ref[...] = jnp.zeros_like(acc_ref)

        acc_ref[...] += jnp.dot(x_ref[...], w_ref[...],
                                preferred_element_type=jnp.float32)

        @pl.when(k == pl.num_programs(2) - 1)
        def _():
            z = acc_ref[...] + b_ref[...]           # f32 bias add
            o_ref[...] = jax.nn.sigmoid(z).astype(o_ref.dtype)

    out = pl.pallas_call(
        kernel,
        out_shape=jax.ShapeDtypeStruct((M_pad, N_pad), jnp.float32),
        grid_spec=pltpu.PrefetchScalarGridSpec(
            num_scalar_prefetch=0,
            grid=grid,
            in_specs=[
                pl.BlockSpec((tm, tk), lambda i, j, k: (i, k)),
                pl.BlockSpec((tk, tn), lambda i, j, k: (k, j)),
                pl.BlockSpec((tm, tn), lambda i, j, k: (0, j)),
            ],
            out_specs=pl.BlockSpec((tm, tn), lambda i, j, k: (i, j)),
            scratch_shapes=[pltpu.VMEM((tm, tn), jnp.float32)],
        ),
        compiler_params=pltpu.CompilerParams(
            dimension_semantics=("parallel", "parallel", "arbitrary"),
            vmem_limit_bytes=VMEM_LIMIT,
        ),
    )(x_p, w_p, b_p)
    return out[:B, :N]


# ---------------------------------------------------------------------------
# Training path: fused  loss = mean_i( logsumexp(sigmoid(xW+b)_i) - sigmoid(xW+b)_{i,y_i} )
# Grid (M_tiles, K_tiles); the class dim stays resident per M-tile so the CE
# epilogue runs on the accumulator without an HBM round-trip.
# ---------------------------------------------------------------------------
def linear_sigmoid_ce_loss(x, w_t, b, y, *, tm_cap=128, tk_cap=512):
    B, K = x.shape
    Kw, N = w_t.shape
    assert K == Kw, "weight/input dim mismatch"

    tm = min(tm_cap, _round_up(B, SUBLANE))
    M_pad = _round_up(B, tm)
    K_pad = _round_up(K, LANE)
    N_pad = _round_up(N, LANE)
    tk = min(tk_cap, K_pad)

    x_p = _pad2d(x, M_pad, K_pad).astype(MXU_DTYPE)
    w_p = _pad2d(w_t, K_pad, N_pad).astype(MXU_DTYPE)
    b_p = jnp.broadcast_to(
        jnp.pad(b.astype(jnp.float32), (0, N_pad - N))[None, :], (tm, N_pad))
    y_p = jnp.pad(y.astype(jnp.int32), (0, M_pad - B)).reshape(M_pad, 1)

    m_tiles = M_pad // tm
    grid = (m_tiles, K_pad // tk)

    def kernel(x_ref, w_ref, b_ref, y_ref, loss_ref, acc_ref):
        i = pl.program_id(0)
        k = pl.program_id(1)

        @pl.when(k == 0)
        def _():
            acc_ref[...] = jnp.zeros_like(acc_ref)

        acc_ref[...] += jnp.dot(x_ref[...], w_ref[...],
                                preferred_element_type=jnp.float32)

        @pl.when(k == pl.num_programs(1) - 1)
        def _():
            # CE is applied to the sigmoid outputs, exactly as in the PyTorch model.
            logits = jax.nn.sigmoid(acc_ref[...] + b_ref[...])          # (tm, N_pad) f32
            cols = jax.lax.broadcasted_iota(jnp.int32, (tm, N_pad), 1)
            rows = jax.lax.broadcasted_iota(jnp.int32, (tm, 1), 0) + i * tm
            # Single read of the logits tile; one validity mask reused for
            # max, exp-sum and target extraction (padded classes -> -inf).
            masked = jnp.where(cols < N, logits, jnp.float32(-1e30))
            mx = jnp.max(masked, axis=-1, keepdims=True)
            ex = jnp.exp(masked - mx)                # padded cols underflow to 0
            lse = jnp.log(jnp.sum(ex, axis=-1, keepdims=True)) + mx
            tgt = jnp.sum(jnp.where(cols == y_ref[...], masked, 0.0),
                          axis=-1, keepdims=True)
            per_row = jnp.where(rows < B, lse - tgt, 0.0)   # mask padded batch rows
            loss_ref[i, 0] = jnp.sum(per_row)

    partial = pl.pallas_call(
        kernel,
        out_shape=jax.ShapeDtypeStruct((m_tiles, 1), jnp.float32),
        grid_spec=pltpu.PrefetchScalarGridSpec(
            num_scalar_prefetch=0,
            grid=grid,
            in_specs=[
                pl.BlockSpec((tm, tk), lambda i, k: (i, k)),
                pl.BlockSpec((tk, N_pad), lambda i, k: (k, 0)),
                pl.BlockSpec((tm, N_pad), lambda i, k: (0, 0)),
                pl.BlockSpec((tm, 1), lambda i, k: (i, 0)),
            ],
            out_specs=pl.BlockSpec(memory_space=pltpu.SMEM),
            scratch_shapes=[pltpu.VMEM((tm, N_pad), jnp.float32)],
        ),
        compiler_params=pltpu.CompilerParams(
            # Full-resident SMEM partial-loss output is written per M-tile; keep the
            # grid sequential here for correctness of the scalar writes.
            dimension_semantics=("arbitrary", "arbitrary"),
            vmem_limit_bytes=VMEM_LIMIT,
        ),
    )(x_p, w_p, b_p, y_p)
    return jnp.sum(partial) / jnp.float32(B)


# ---------------------------------------------------------------------------
# Model wrapper mirroring TorchModel.forward
# ---------------------------------------------------------------------------
def torch_model_forward(params, x, y=None):
    w_t, b = params
    if y is not None:
        return linear_sigmoid_ce_loss(x, w_t, b, y)
    return linear_sigmoid(x, w_t, b)


def init_params(key, input_size):
    # nn.Linear(input_size, input_size): weight (out, in), bias (out,). We store
    # the weight pre-transposed to (in, out) so the kernel hot path is x @ W.
    kw, kb = jax.random.split(key)
    bound = float(input_size) ** -0.5
    w = jax.random.uniform(kw, (input_size, input_size), jnp.float32, -bound, bound)
    b = jax.random.uniform(kb, (input_size,), jnp.float32, -bound, bound)
    return w.T, b


if __name__ == "__main__":
    B, D = 8, 32
    key = jax.random.PRNGKey(0)
    kp, kx, ky = jax.random.split(key, 3)

    params = init_params(kp, D)
    x = jax.random.normal(kx, (B, D), jnp.float32)
    y = jax.random.randint(ky, (B,), 0, D, jnp.int32)

    # Inference path
    y_pred = jax.block_until_ready(torch_model_forward(params, x))

    # Fused training-loss path
    loss = jax.block_until_ready(torch_model_forward(params, x, y))

    # Plain-JAX reference with the same bf16 MXU operands / f32 accumulation.
    w_t, b = params
    z_ref = jnp.dot(x.astype(MXU_DTYPE), w_t.astype(MXU_DTYPE),
                    preferred_element_type=jnp.float32) + b[None, :]
    ref_pred = jax.nn.sigmoid(z_ref)
    ref_lse = jax.nn.logsumexp(ref_pred, axis=-1)
    ref_loss = jnp.mean(ref_lse - ref_pred[jnp.arange(B), y])

    assert y_pred.shape == (B, D), "y_pred shape mismatch"
    assert jnp.allclose(y_pred, ref_pred, atol=1e-4), "y_pred mismatch"
    assert jnp.allclose(loss, ref_loss, atol=1e-4), "loss mismatch"

    print("KERNEL_OK")
</pallas_src>

<mosaic_0001>
module attributes {stable_mosaic.version = 11 : i64} {
  func.func @kernel(%arg0: i32, %arg1: i32, %arg2: i32, %arg3: memref<8x128xbf16, #tpu.memory_space<vmem>>, %arg4: memref<128x128xbf16, #tpu.memory_space<vmem>>, %arg5: memref<8x128xf32, #tpu.memory_space<vmem>>, %arg6: memref<8x128xf32, #tpu.memory_space<vmem>>, %arg7: memref<8x128xf32, #tpu.memory_space<vmem>>) attributes {dimension_semantics = [#tpu.dimension_semantics<parallel>, #tpu.dimension_semantics<parallel>, #tpu.dimension_semantics<arbitrary>], iteration_bounds = array<i64: 1, 1, 1>, scalar_prefetch = 0 : i64, scratch_operands = 1 : i64, tpu.core_type = #tpu.core_type<tc>, window_params = [{transform_indices = @transform_0, window_bounds = array<i64: 8, 128>}, {transform_indices = @transform_1, window_bounds = array<i64: 128, 128>}, {transform_indices = @transform_2, window_bounds = array<i64: 8, 128>}, {transform_indices = @transform_3, window_bounds = array<i64: 8, 128>}]} {
    %c0_i32 = arith.constant 0 : i32
    %0 = arith.cmpi eq, %arg2, %c0_i32 : i32
    %1 = arith.extui %0 : i1 to i32
    %c0_i32_0 = arith.constant 0 : i32
    %2 = arith.cmpi ne, %1, %c0_i32_0 : i32
    scf.if %2 {
      %cst_10 = arith.constant 0.000000e+00 : f32
      %12 = vector.broadcast %cst_10 : f32 to vector<8x128xf32>
      %c0_11 = arith.constant 0 : index
      %c0_12 = arith.constant 0 : index
      %13 = vector.load %arg7[%c0_11, %c0_12] : memref<8x128xf32, #tpu.memory_space<vmem>>, vector<8x128xf32>
      tpu.vector_store %arg7[%c0_11, %c0_12], %12 {strides = array<i32>} : memref<8x128xf32, #tpu.memory_space<vmem>>, vector<8x128xf32>,
    } else {
    }
    %c0 = arith.constant 0 : index
    %c0_1 = arith.constant 0 : index
    %3 = vector.load %arg7[%c0, %c0_1] : memref<8x128xf32, #tpu.memory_space<vmem>>, vector<8x128xf32>
    %c0_2 = arith.constant 0 : index
    %c0_3 = arith.constant 0 : index
    %4 = vector.load %arg3[%c0_2, %c0_3] : memref<8x128xbf16, #tpu.memory_space<vmem>>, vector<8x128xbf16>
    %c0_4 = arith.constant 0 : index
    %c0_5 = arith.constant 0 : index
    %5 = vector.load %arg4[%c0_4, %c0_5] : memref<128x128xbf16, #tpu.memory_space<vmem>>, vector<128x128xbf16>
    %cst = arith.constant dense<0.000000e+00> : vector<8x128xf32>
    %6 = tpu.matmul %4, %5, %cst {dimension_numbers = #tpu.dot_dimension_numbers<[1], [0], [0], [1], [0, 0, 1, 1], [], []>} : vector<8x128xbf16>, vector<128x128xbf16>, vector<8x128xf32> -> vector<8x128xf32>
    %7 = arith.addf %3, %6 : vector<8x128xf32>
    %c0_6 = arith.constant 0 : index
    %c0_7 = arith.constant 0 : index
    %8 = vector.load %arg7[%c0_6, %c0_7] : memref<8x128xf32, #tpu.memory_space<vmem>>, vector<8x128xf32>
    tpu.vector_store %arg7[%c0_6, %c0_7], %7 {strides = array<i32>} : memref<8x128xf32, #tpu.memory_space<vmem>>, vector<8x128xf32>,
    %c0_i32_8 = arith.constant 0 : i32
    %9 = arith.cmpi eq, %arg2, %c0_i32_8 : i32
    %10 = arith.extui %9 : i1 to i32
    %c0_i32_9 = arith.constant 0 : i32
    %11 = arith.cmpi ne, %10, %c0_i32_9 : i32
    scf.if %11 {
      %c0_10 = arith.constant 0 : index
      %c0_11 = arith.constant 0 : index
      %12 = vector.load %arg7[%c0_10, %c0_11] : memref<8x128xf32, #tpu.memory_space<vmem>>, vector<8x128xf32>
      %c0_12 = arith.constant 0 : index
      %c0_13 = arith.constant 0 : index
      %13 = vector.load %arg5[%c0_12, %c0_13] : memref<8x128xf32, #tpu.memory_space<vmem>>, vector<8x128xf32>
      %14 = arith.addf %12, %13 : vector<8x128xf32>
      %15 = arith.negf %14 : vector<8x128xf32>
      %16 = math.exp %15 : vector<8x128xf32>
      %cst_14 = arith.constant 1.000000e+00 : f32
      %17 = vector.broadcast %cst_14 : f32 to vector<8x128xf32>
      %18 = arith.addf %17, %16 : vector<8x128xf32>
      %19 = arith.divf %17, %18 : vector<8x128xf32>
      %c0_15 = arith.constant 0 : index
      %c0_16 = arith.constant 0 : index
      %20 = vector.load %arg6[%c0_15, %c0_16] : memref<8x128xf32, #tpu.memory_space<vmem>>, vector<8x128xf32>
      tpu.vector_store %arg6[%c0_15, %c0_16], %19 {strides = array<i32>} : memref<8x128xf32, #tpu.memory_space<vmem>>, vector<8x128xf32>,
    } else {
    }
    return
  }
  func.func @transform_0(%arg0: i32, %arg1: i32, %arg2: i32) -> (i32, i32) {
    %c0_i32 = arith.constant 0 : i32
    return %arg0, %arg2 : i32, i32
  }
  func.func @transform_1(%arg0: i32, %arg1: i32, %arg2: i32) -> (i32, i32) {
    %c0_i32 = arith.constant 0 : i32
    return %arg2, %arg1 : i32, i32
  }
  func.func @transform_2(%arg0: i32, %arg1: i32, %arg2: i32) -> (i32, i32) {
    %c0_i32 = arith.constant 0 : i32
    %c0_i32_0 = arith.constant 0 : i32
    return %c0_i32, %arg1 : i32, i32
  }
  func.func @transform_3(%arg0: i32, %arg1: i32, %arg2: i32) -> (i32, i32) {
    %c0_i32 = arith.constant 0 : i32
    return %arg0, %arg1 : i32, i32
  }
}

</mosaic_0001>

<llo_original>
// kernel: tpu_custom_call.1
$region0: #{tpu_custom_call.1}
  #allocation0 [shape = 'u32[]', space=smem, size = 0x4, offset = 0x4, fixed_abs, tag = 'smem constant byte address 0x4 - core index']
  #allocation1 [shape = 'u32[144,128]{1,0:T(1,128)}', space=vmem, size = 0x12000, scoped, tag = 'internal scratch']
  #allocation2 [shape = 'f32[8,128]{1,0:T(8,128)}', space=vmem, size = 0x1000, scoped, tag = 'scratch operand']
  %s0 = inlined_call_operand.hbm [shape: bf16[8,128], index: 0, kind: input, shape index: {}]
  %s1 = inlined_call_operand.hbm [shape: bf16[128,128], index: 1, kind: input, shape index: {}]
  %s2 = inlined_call_operand.hbm [shape: f32[8,128], index: 2, kind: input, shape index: {}]
  %s3 = inlined_call_operand.hbm [shape: f32[8,128], index: 3, kind: output, shape index: {}]
  %s4 = sld [smem:[#allocation0]]
  $region42: #{tpu_custom_call.1} parent=0
    _
  %s6 = ssub.s32 1, %s4
  %s7 = scalar_select 0, %s6, %s4
  $region1: #{tpu_custom_call.1} parent=0
    #allocation3 [shape = 'u8[2048]{0}', space=vmem, size = 0x800, scoped, tag = 'input window, operand 0, single buffered']
    #allocation4 [shape = 's32[1]{0}', space=sflag, size = 0x4, scoped, tag = 'scoped memory for tpu_custom_call.1']
    #allocation5 [shape = 's32[1]{0}', space=sflag, size = 0x4, scoped, tag = 'scoped memory for tpu_custom_call.1']
    #allocation6 [shape = 'u8[32768]{0}', space=vmem, size = 0x8000, scoped, tag = 'input window, operand 1, single buffered']
    #allocation7 [shape = 's32[1]{0}', space=sflag, size = 0x4, scoped, tag = 'scoped memory for tpu_custom_call.1']
    #allocation8 [shape = 'u8[4096]{0}', space=vmem, size = 0x1000, scoped, tag = 'input window, operand 2, single buffered']
    #allocation9 [shape = 'u8[4096]{0}', space=vmem, size = 0x1000, scoped, tag = 'output window, operand 0, single buffered']
    %8 = vsyncpa [#allocation4], 0
    %9 = vsyncpa [#allocation7], 0
    %10 = vsyncpa [#allocation5], 0
    // Predicated region
    $region2: #{tpu_custom_call.1} parent=1 // pred_check
      _
    $region3: #{tpu_custom_call.1} parent=1 // pred_check_branch
      %12 = sbr.rel (0) target = $region5
    $region4: #{tpu_custom_call.1} parent=1 // pred_region
      %s14 = ssub.s32 64, 64
      %15 = vsyncadd [#allocation4], %s14
      %s17 = sshll.u32 [#allocation3], 4
      %s18 = int_to_ptr.vmem [resolvable:$true] %s17
      %20 = dma.hbm_to_vmem [thread:$0]  %s0, 64, %s18, [#allocation4]
    $region5: #{tpu_custom_call.1} parent=1 // pred_fallthru
      _
    // Predicated region
    $region6: #{tpu_custom_call.1} parent=1 // pred_check
      _
    $region7: #{tpu_custom_call.1} parent=1 // pred_check_branch
      %22 = sbr.rel (0) target = $region9
    $region8: #{tpu_custom_call.1} parent=1 // pred_region
      %s24 = ssub.s32 1024, 1024
      %25 = vsyncadd [#allocation7], %s24
      %s26 = sshll.u32 [#allocation6], 4
      %s27 = int_to_ptr.vmem [resolvable:$true] %s26
      %32 = dma.hbm_to_vmem [thread:$0]  %s1, 1024, %s27, [#allocation7], 64, 64, 4
    $region9: #{tpu_custom_call.1} parent=1 // pred_fallthru
      _
    // Predicated region
    $region10: #{tpu_custom_call.1} parent=1 // pred_check
      _
    $region11: #{tpu_custom_call.1} parent=1 // pred_check_branch
      %34 = sbr.rel (0) target = $region13
    $region12: #{tpu_custom_call.1} parent=1 // pred_region
      %s36 = ssub.s32 128, 128
      %37 = vsyncadd [#allocation7], %s36
      %s39 = sshll.u32 [#allocation8], 4
      %s40 = int_to_ptr.vmem [resolvable:$true] %s39
      %42 = dma.hbm_to_vmem [thread:$0]  %s2, 128, %s40, [#allocation7]
    $region13: #{tpu_custom_call.1} parent=1 // pred_fallthru
      _
    // Predicated region
    $region14: #{tpu_custom_call.1} parent=1 // pred_check
      _
    $region15: #{tpu_custom_call.1} parent=1 // pred_check_branch
      %44 = sbr.rel (0) target = $region17
    $region16: #{tpu_custom_call.1} parent=1 // pred_region
      %45 = dma.done [#allocation4], 64
    $region17: #{tpu_custom_call.1} parent=1 // pred_fallthru
      _
    // Predicated region
    $region18: #{tpu_custom_call.1} parent=1 // pred_check
      _
    $region19: #{tpu_custom_call.1} parent=1 // pred_check_branch
      %47 = sbr.rel (0) target = $region21
    $region20: #{tpu_custom_call.1} parent=1 // pred_region
      %48 = dma.done [#allocation7], 1024
    $region21: #{tpu_custom_call.1} parent=1 // pred_fallthru
      _
    // Predicated region
    $region22: #{tpu_custom_call.1} parent=1 // pred_check
      _
    $region23: #{tpu_custom_call.1} parent=1 // pred_check_branch
      %50 = sbr.rel (0) target = $region25
    $region24: #{tpu_custom_call.1} parent=1 // pred_region
      %51 = dma.done [#allocation7], 128
    $region25: #{tpu_custom_call.1} parent=1 // pred_fallthru
      _
    %p53 = scmp.eq.s32.totalorder 0, 0
    // Predicated region
    $region26: #{tpu_custom_call.1} parent=1 // pred_check
      %p54 = pneg %p53
    $region27: #{tpu_custom_call.1} parent=1 // pred_check_branch
      %56 = sbr.rel (%p54) target = $region29
    $region28: #{tpu_custom_call.1} parent=1 // pred_region
      %57 = vst [vmem:[#allocation2] sm:$0xff] 0.0
    $region29: #{tpu_custom_call.1} parent=1 // pred_fallthru
      _
    %v58 = vld [vmem:[#allocation2] sm:$0xff]
    %v59 = vld [vmem:[#allocation3] sm:$0xf]
    %v60 = vld [vmem:[#allocation6] sm:$0xf]
    %v61 = vld [vmem:[#allocation6 + $0x4] sm:$0xf]
    %v62 = vld [vmem:[#allocation6 + $0x8] sm:$0xf]
    %v63 = vld [vmem:[#allocation6 + $0xc] sm:$0xf]
    %v64 = vld [vmem:[#allocation6 + $0x10] sm:$0xf]
    %v65 = vld [vmem:[#allocation6 + $0x14] sm:$0xf]
    %v66 = vld [vmem:[#allocation6 + $0x18] sm:$0xf]
    %v67 = vld [vmem:[#allocation6 + $0x1c] sm:$0xf]
    %v68 = vld [vmem:[#allocation6 + $0x20] sm:$0xf]
    %v69 = vld [vmem:[#allocation6 + $0x24] sm:$0xf]
    %v70 = vld [vmem:[#allocation6 + $0x28] sm:$0xf]
    %v71 = vld [vmem:[#allocation6 + $0x2c] sm:$0xf]
    %v72 = vld [vmem:[#allocation6 + $0x30] sm:$0xf]
    %v73 = vld [vmem:[#allocation6 + $0x34] sm:$0xf]
    %v74 = vld [vmem:[#allocation6 + $0x38] sm:$0xf]
    %v75 = vld [vmem:[#allocation6 + $0x3c] sm:$0xf]
    %v92 = vunpack.c.l.b16 %v60
    %v93 = vunpack.c.l.b16 %v61
    %v94 = vunpack.c.l.b16 %v62
    %v95 = vunpack.c.l.b16 %v63
    %v96 = vunpack.c.l.b16 %v64
    %v97 = vunpack.c.l.b16 %v65
    %v98 = vunpack.c.l.b16 %v66
    %v99 = vunpack.c.l.b16 %v67
    %v100 = vunpack.c.l.b16 %v68
    %v101 = vunpack.c.l.b16 %v69
    %v102 = vunpack.c.l.b16 %v70
    %v103 = vunpack.c.l.b16 %v71
    %v104 = vunpack.c.l.b16 %v72
    %v105 = vunpack.c.l.b16 %v73
    %v106 = vunpack.c.l.b16 %v74
    %v107 = vunpack.c.l.b16 %v75
    %v108 = vpack.c.b16 %v93, %v92
    %v109 = vpack.c.b16 %v95, %v94
    %v110 = vpack.c.b16 %v97, %v96
    %v111 = vpack.c.b16 %v99, %v98
    %v112 = vpack.c.b16 %v101, %v100
    %v113 = vpack.c.b16 %v103, %v102
    %v114 = vpack.c.b16 %v105, %v104
    %v115 = vpack.c.b16 %v107, %v106
    %124 = vmatprep.subr.bf16.mxu0 0
    %125 = vmatpush1.bf16.msra.mxu0 %v108
    %126 = vmatprep.subr.bf16.mxu0 0
    %127 = vmatpush1.bf16.msra.mxu0 %v109
    %128 = vmatprep.subr.bf16.mxu0 0
    %129 = vmatpush1.bf16.msra.mxu0 %v110
    %130 = vmatprep.subr.bf16.mxu0 0
    %131 = vmatpush1.bf16.msra.mxu0 %v111
    %132 = vmatprep.subr.bf16.mxu0 0
    %133 = vmatpush1.bf16.msra.mxu0 %v112
    %134 = vmatprep.subr.bf16.mxu0 0
    %135 = vmatpush1.bf16.msra.mxu0 %v113
    %136 = vmatprep.subr.bf16.mxu0 0
    %137 = vmatpush1.bf16.msra.mxu0 %v114
    %138 = vmatprep.subr.bf16.mxu0 0
    %139 = vmatpush1.bf16.msra.mxu0 %v115
    %140 = vmatprep.subr.bf16.mxu0 0
    %141 = vmatpush1.bf16.msra.mxu0 0
    %142 = vmatprep.subr.bf16.mxu0 0
    %143 = vmatpush1.bf16.msra.mxu0 0
    %144 = vmatprep.subr.bf16.mxu0 0
    %145 = vmatpush1.bf16.msra.mxu0 0
    %146 = vmatprep.subr.bf16.mxu0 0
    %147 = vmatpush1.bf16.msra.mxu0 0
    %148 = vmatprep.subr.bf16.mxu0 0
    %149 = vmatpush1.bf16.msra.mxu0 0
    %150 = vmatprep.subr.bf16.mxu0 0
    %151 = vmatpush1.bf16.msra.mxu0 0
    %152 = vmatprep.subr.bf16.mxu0 0
    %153 = vmatpush1.bf16.msra.mxu0 0
    %154 = vmatprep.subr.bf16.mxu0 0
    %155 = vmatpush1.bf16.msra.mxu0 0
    %156 = vmatprep.mubr.bf16.mxu0 0
    %157 = vmatmul.mubr.bf16.gmra.mrb[0].mxu0 %v59
    %v158 = vpop.f32.mrb[0].mxu0
    %v159 = vadd.f32 0.0, %v158
    %v160 = vpop.f32.mrb[0].mxu0
    %v161 = vpop.f32.mrb[0].mxu0
    %v162 = vpop.f32.mrb[0].mxu0
    %163 = vdwg.mxu0
    %v164 = vadd.f32 %v58, %v159
    %165 = vst [vmem:[#allocation2] sm:$0xff] %v164
    // Predicated region
    $region30: #{tpu_custom_call.1} parent=1 // pred_check
      %p166 = pneg %p53
    $region31: #{tpu_custom_call.1} parent=1 // pred_check_branch
      %168 = sbr.rel (%p166) target = $region33
    $region32: #{tpu_custom_call.1} parent=1 // pred_region
      %v169 = vld [vmem:[#allocation2] sm:$0xff]
      %v170 = vld [vmem:[#allocation8] sm:$0xff]
      %v171 = vadd.f32 %v169, %v170
      %v172 = vxor.u32 %v171, 2147483648
      %v173 = vmul.f32 %v172, 1.442695
      %v174 = vpow.pop %v173
      %v175 = vadd.f32 %v174, 1.0
      %v176 = vrcp.pop %v175
      %v177 = vmul.f32 1.0, %v176
      %178 = vst [vmem:[#allocation9] sm:$0xff] %v177
    $region33: #{tpu_custom_call.1} parent=1 // pred_fallthru
      _
    // Predicated region
    $region34: #{tpu_custom_call.1} parent=1 // pred_check
      _
    $region35: #{tpu_custom_call.1} parent=1 // pred_check_branch
      %180 = sbr.rel (0) target = $region37
    $region36: #{tpu_custom_call.1} parent=1 // pred_region
      %s182 = ssub.s32 128, 128
      %183 = vsyncadd [#allocation5], %s182
      %s185 = sshll.u32 [#allocation9], 4
      %s186 = int_to_ptr.vmem [resolvable:$true] %s185
      %188 = dma.vmem_to_hbm [thread:$0]  %s186, 128, %s3, [#allocation5]
    $region37: #{tpu_custom_call.1} parent=1 // pred_fallthru
      _
    // Predicated region
    $region38: #{tpu_custom_call.1} parent=1 // pred_check
      _
    $region39: #{tpu_custom_call.1} parent=1 // pred_check_branch
      %190 = sbr.rel (0) target = $region41
    $region40: #{tpu_custom_call.1} parent=1 // pred_region
      %191 = dma.done [#allocation5], 128
    $region41: #{tpu_custom_call.1} parent=1 // pred_fallthru
      _
    %192 = vsyncpa [#allocation4], 1
    %193 = vsyncpa [#allocation7], 1
    %194 = vsyncpa [#allocation5], 1

</llo_original>
